<compile_context>
chip_gen: v5e
topology: v5e:2x2
jax: 0.10.0
libtpu: 0.0.40
codegen_flags: <defaults>
</compile_context>

<pallas_src>
import math
from functools import partial

import jax
import jax.numpy as jnp
from jax.experimental import pallas as pl
from jax.experimental.pallas import tpu as pltpu


def _round_up(x, m):
    return ((x + m - 1) // m) * m


def _linear_kernel_f32(x_ref, w_ref, b_ref, o_ref):
    """f32 output: accumulate straight into the resident output block."""
    k = pl.program_id(2)

    @pl.when(k == 0)
    def _():
        o_ref[...] = jnp.zeros_like(o_ref)

    # x_ref: (tm, tk), w_ref: (tn, tk)  ->  (tm, tn), contracting on K (trans-B).
    o_ref[...] += jax.lax.dot_general(
        x_ref[...],
        w_ref[...],
        (((1,), (1,)), ((), ())),
        preferred_element_type=jnp.float32,
    )

    @pl.when(k == pl.num_programs(2) - 1)
    def _():
        o_ref[...] += b_ref[...].astype(o_ref.dtype)


def _linear_kernel_acc(x_ref, w_ref, b_ref, o_ref, acc_ref):
    """Low-precision output: accumulate in an f32 VMEM scratch, cast at the end."""
    k = pl.program_id(2)

    @pl.when(k == 0)
    def _():
        acc_ref[...] = jnp.zeros_like(acc_ref)

    acc_ref[...] += jax.lax.dot_general(
        x_ref[...],
        w_ref[...],
        (((1,), (1,)), ((), ())),
        preferred_element_type=jnp.float32,
    )

    @pl.when(k == pl.num_programs(2) - 1)
    def _():
        o_ref[...] = (acc_ref[...] + b_ref[...].astype(jnp.float32)).astype(o_ref.dtype)


def linear_norm_forward(x, weight, bias=None, *, tm=256, tn=256, tk=512):
    """y = x @ weight.T + bias with the matmul done in a Pallas TPU kernel.

    x:      (..., in_dim)
    weight: (out_dim, in_dim)   (native PyTorch nn.Linear layout — NOT transposed)
    bias:   (out_dim,) or None
    """
    *lead, in_dim = x.shape
    out_dim = weight.shape[0]
    M = int(math.prod(lead)) if lead else 1

    x2d = x.reshape(M, in_dim)

    # Effective tile sizes: never larger than the (aligned) problem dims, and
    # shaped to respect the (8, 128) TPU tiling constraint after padding.
    tm_e = min(tm, _round_up(M, 8))
    tn_e = min(tn, _round_up(out_dim, 128))
    tk_e = min(tk, _round_up(in_dim, 128))

    Mp = _round_up(M, tm_e)
    Np = _round_up(out_dim, tn_e)
    Kp = _round_up(in_dim, tk_e)

    # Zero-pad to tile multiples (padded K contributes 0 to the dot; padded
    # M/N rows/cols are sliced off after the call).
    if (Mp, Kp) != (M, in_dim):
        x2d = jnp.pad(x2d, ((0, Mp - M), (0, Kp - in_dim)))
    w = weight
    if (Np, Kp) != (out_dim, in_dim):
        w = jnp.pad(weight, ((0, Np - out_dim), (0, Kp - in_dim)))
    if bias is None:
        b2d = jnp.zeros((1, Np), dtype=x.dtype)
    else:
        b2d = bias.reshape(1, out_dim)
        if Np != out_dim:
            b2d = jnp.pad(b2d, ((0, 0), (0, Np - out_dim)))

    grid = (Mp // tm_e, Np // tn_e, Kp // tk_e)

    out_dtype = x.dtype
    if out_dtype == jnp.float32:
        kernel = _linear_kernel_f32
        scratch_shapes = []
    else:
        kernel = _linear_kernel_acc
        scratch_shapes = [pltpu.VMEM((tm_e, tn_e), jnp.float32)]

    itemsize = jnp.dtype(out_dtype).itemsize
    cost = pl.CostEstimate(
        flops=2 * Mp * Np * Kp,
        transcendentals=0,
        bytes_accessed=itemsize * (Mp * Kp + Np * Kp + Mp * Np),
    )

    y2d = pl.pallas_call(
        kernel,
        out_shape=jax.ShapeDtypeStruct((Mp, Np), out_dtype),
        grid_spec=pltpu.PrefetchScalarGridSpec(
            num_scalar_prefetch=0,
            grid=grid,
            in_specs=[
                pl.BlockSpec((tm_e, tk_e), lambda i, j, k: (i, k)),  # x tile
                pl.BlockSpec((tn_e, tk_e), lambda i, j, k: (j, k)),  # weight tile (native layout)
                pl.BlockSpec((1, tn_e), lambda i, j, k: (0, j)),     # bias tile
            ],
            out_specs=pl.BlockSpec((tm_e, tn_e), lambda i, j, k: (i, j)),
            scratch_shapes=scratch_shapes,
        ),
        compiler_params=pltpu.CompilerParams(
            dimension_semantics=("parallel", "parallel", "arbitrary"),
            vmem_limit_bytes=48 * 1024 * 1024,  # safe on v5e/v6e (128 MiB) and v7x (64 MiB)
        ),
        cost_estimate=cost,
    )(x2d, w, b2d)

    y2d = y2d[:M, :out_dim]
    return y2d.reshape(*lead, out_dim)


def init_linear_norm_params(key, in_dim, out_dim, w_init_gain="linear"):
    """Xavier-uniform weight (gain('linear') == 1.0) + torch-default bias init."""
    gain = 1.0
    bound_w = gain * math.sqrt(6.0 / (in_dim + out_dim))
    k_w, k_b = jax.random.split(key)
    weight = jax.random.uniform(
        k_w, (out_dim, in_dim), jnp.float32, minval=-bound_w, maxval=bound_w
    )
    bound_b = 1.0 / math.sqrt(in_dim)
    bias = jax.random.uniform(
        k_b, (out_dim,), jnp.float32, minval=-bound_b, maxval=bound_b
    )
    return weight, bias


if __name__ == "__main__":
    key = jax.random.PRNGKey(0)
    k_x, k_p = jax.random.split(key)

    # Small, deliberately non-aligned shapes to exercise the padding path:
    # M = 2*7 = 14 (pads to 16), in_dim = 96 (pads to 128), out_dim = 160 (pads to 256).
    batch, seq, in_dim, out_dim = 2, 7, 96, 160
    x = jax.random.normal(k_x, (batch, seq, in_dim), jnp.float32)
    weight, bias = init_linear_norm_params(k_p, in_dim, out_dim)

    fwd = jax.jit(linear_norm_forward)
    y = fwd(x, weight, bias)
    y = jax.block_until_ready(y)

    # Sanity check against plain JAX reference.
    y_ref = x @ weight.T + bias
    assert y.shape == (batch, seq, out_dim)
    assert jnp.allclose(y, y_ref, atol=1e-5, rtol=1e-5)

    print("KERNEL_OK")
</pallas_src>

<mosaic_0001>
module attributes {stable_mosaic.version = 11 : i64} {
  func.func @_linear_kernel_f32(%arg0: i32, %arg1: i32, %arg2: i32, %arg3: memref<16x128xf32, #tpu.memory_space<vmem>>, %arg4: memref<256x128xf32, #tpu.memory_space<vmem>>, %arg5: memref<1x256xf32, #tpu.memory_space<vmem>>, %arg6: memref<16x256xf32, #tpu.memory_space<vmem>>) attributes {dimension_semantics = [#tpu.dimension_semantics<parallel>, #tpu.dimension_semantics<parallel>, #tpu.dimension_semantics<arbitrary>], iteration_bounds = array<i64: 1, 1, 1>, scalar_prefetch = 0 : i64, scratch_operands = 0 : i64, tpu.core_type = #tpu.core_type<tc>, window_params = [{transform_indices = @transform_0, window_bounds = array<i64: 16, 128>}, {transform_indices = @transform_1, window_bounds = array<i64: 256, 128>}, {transform_indices = @transform_2, window_bounds = array<i64: 1, 256>}, {transform_indices = @transform_3, window_bounds = array<i64: 16, 256>}]} {
    %c0_i32 = arith.constant 0 : i32
    %0 = arith.cmpi eq, %arg2, %c0_i32 : i32
    %1 = arith.extui %0 : i1 to i32
    %c0_i32_0 = arith.constant 0 : i32
    %2 = arith.cmpi ne, %1, %c0_i32_0 : i32
    scf.if %2 {
      %cst_10 = arith.constant 0.000000e+00 : f32
      %12 = vector.broadcast %cst_10 : f32 to vector<16x256xf32>
      %c0_11 = arith.constant 0 : index
      %c0_12 = arith.constant 0 : index
      %13 = vector.load %arg6[%c0_11, %c0_12] : memref<16x256xf32, #tpu.memory_space<vmem>>, vector<16x256xf32>
      tpu.vector_store %arg6[%c0_11, %c0_12], %12 {strides = array<i32>} : memref<16x256xf32, #tpu.memory_space<vmem>>, vector<16x256xf32>,
    } else {
    }
    %c0 = arith.constant 0 : index
    %c0_1 = arith.constant 0 : index
    %3 = vector.load %arg6[%c0, %c0_1] : memref<16x256xf32, #tpu.memory_space<vmem>>, vector<16x256xf32>
    %c0_2 = arith.constant 0 : index
    %c0_3 = arith.constant 0 : index
    %4 = vector.load %arg3[%c0_2, %c0_3] : memref<16x128xf32, #tpu.memory_space<vmem>>, vector<16x128xf32>
    %c0_4 = arith.constant 0 : index
    %c0_5 = arith.constant 0 : index
    %5 = vector.load %arg4[%c0_4, %c0_5] : memref<256x128xf32, #tpu.memory_space<vmem>>, vector<256x128xf32>
    %cst = arith.constant dense<0.000000e+00> : vector<16x256xf32>
    %6 = tpu.matmul %4, %5, %cst {dimension_numbers = #tpu.dot_dimension_numbers<[1], [1], [0], [0], [0, 0, 1, 0], [], []>} : vector<16x128xf32>, vector<256x128xf32>, vector<16x256xf32> -> vector<16x256xf32>
    %7 = arith.addf %3, %6 : vector<16x256xf32>
    %c0_6 = arith.constant 0 : index
    %c0_7 = arith.constant 0 : index
    %8 = vector.load %arg6[%c0_6, %c0_7] : memref<16x256xf32, #tpu.memory_space<vmem>>, vector<16x256xf32>
    tpu.vector_store %arg6[%c0_6, %c0_7], %7 {strides = array<i32>} : memref<16x256xf32, #tpu.memory_space<vmem>>, vector<16x256xf32>,
    %c0_i32_8 = arith.constant 0 : i32
    %9 = arith.cmpi eq, %arg2, %c0_i32_8 : i32
    %10 = arith.extui %9 : i1 to i32
    %c0_i32_9 = arith.constant 0 : i32
    %11 = arith.cmpi ne, %10, %c0_i32_9 : i32
    scf.if %11 {
      %c0_10 = arith.constant 0 : index
      %c0_11 = arith.constant 0 : index
      %12 = vector.load %arg6[%c0_10, %c0_11] : memref<16x256xf32, #tpu.memory_space<vmem>>, vector<16x256xf32>
      %c0_12 = arith.constant 0 : index
      %c0_13 = arith.constant 0 : index
      %13 = vector.load %arg5[%c0_12, %c0_13] : memref<1x256xf32, #tpu.memory_space<vmem>>, vector<1x256xf32>
      %14 = vector.broadcast %13 : vector<1x256xf32> to vector<16x256xf32>
      %15 = arith.addf %12, %14 : vector<16x256xf32>
      %c0_14 = arith.constant 0 : index
      %c0_15 = arith.constant 0 : index
      %16 = vector.load %arg6[%c0_14, %c0_15] : memref<16x256xf32, #tpu.memory_space<vmem>>, vector<16x256xf32>
      tpu.vector_store %arg6[%c0_14, %c0_15], %15 {strides = array<i32>} : memref<16x256xf32, #tpu.memory_space<vmem>>, vector<16x256xf32>,
    } else {
    }
    return
  }
  func.func @transform_0(%arg0: i32, %arg1: i32, %arg2: i32) -> (i32, i32) {
    %c0_i32 = arith.constant 0 : i32
    return %arg0, %arg2 : i32, i32
  }
  func.func @transform_1(%arg0: i32, %arg1: i32, %arg2: i32) -> (i32, i32) {
    %c0_i32 = arith.constant 0 : i32
    return %arg1, %arg2 : i32, i32
  }
  func.func @transform_2(%arg0: i32, %arg1: i32, %arg2: i32) -> (i32, i32) {
    %c0_i32 = arith.constant 0 : i32
    %c0_i32_0 = arith.constant 0 : i32
    return %c0_i32, %arg1 : i32, i32
  }
  func.func @transform_3(%arg0: i32, %arg1: i32, %arg2: i32) -> (i32, i32) {
    %c0_i32 = arith.constant 0 : i32
    return %arg0, %arg1 : i32, i32
  }
}

</mosaic_0001>

<llo_original>
// kernel: linear_norm_forward.1
$region0: #{linear_norm_forward.1}
  #allocation0 [shape = 'u32[]', space=smem, size = 0x4, offset = 0x4, fixed_abs, tag = 'smem constant byte address 0x4 - core index']
  #allocation1 [shape = 'u32[72,128]{1,0:T(1,128)}', space=vmem, size = 0x9000, scoped, tag = 'internal scratch']
  %s0 = inlined_call_operand.vmem [shape: f32[16,128], index: 0, kind: input, shape index: {}]
  %s1 = inlined_call_operand.vmem [shape: f32[256,128], index: 1, kind: input, shape index: {}]
  %s2 = inlined_call_operand.vmem [shape: f32[1,256], index: 2, kind: input, shape index: {}]
  %s3 = inlined_call_operand.vmem [shape: f32[16,256], index: 3, kind: output, shape index: {}]
  %s4 = sld [smem:[#allocation0]]
  $region30: #{linear_norm_forward.1} parent=0
    _
  %s6 = ssub.s32 1, %s4
  %s7 = scalar_select 0, %s6, %s4
  // Predicated region
  $region2: #{linear_norm_forward.1} parent=0 // pred_check
    _
  $region3: #{linear_norm_forward.1} parent=0 // pred_check_branch
    %9 = sbr.rel (0) target = $region5
  $region4: #{linear_norm_forward.1} parent=0 // pred_region
    _
  $region5: #{linear_norm_forward.1} parent=0 // pred_fallthru
    _
  // Predicated region
  $region6: #{linear_norm_forward.1} parent=0 // pred_check
    _
  $region7: #{linear_norm_forward.1} parent=0 // pred_check_branch
    %11 = sbr.rel (0) target = $region9
  $region8: #{linear_norm_forward.1} parent=0 // pred_region
    _
  $region9: #{linear_norm_forward.1} parent=0 // pred_fallthru
    _
  // Predicated region
  $region10: #{linear_norm_forward.1} parent=0 // pred_check
    _
  $region11: #{linear_norm_forward.1} parent=0 // pred_check_branch
    %13 = sbr.rel (0) target = $region13
  $region12: #{linear_norm_forward.1} parent=0 // pred_region
    _
  $region13: #{linear_norm_forward.1} parent=0 // pred_fallthru
    _
  %p14 = scmp.eq.s32.totalorder 0, 0
  // Predicated region
  $region14: #{linear_norm_forward.1} parent=0 // pred_check
    %p15 = pneg %p14
  $region15: #{linear_norm_forward.1} parent=0 // pred_check_branch
    %17 = sbr.rel (%p15) target = $region17
  $region16: #{linear_norm_forward.1} parent=0 // pred_region
    %18 = vst [vmem:[%s3] sm:$0xff] 0.0
    %19 = vst [vmem:[%s3 + $0x8] sm:$0xff] 0.0
    %20 = vst [vmem:[%s3 + $0x10] sm:$0xff] 0.0
    %21 = vst [vmem:[%s3 + $0x18] sm:$0xff] 0.0
  $region17: #{linear_norm_forward.1} parent=0 // pred_fallthru
    _
  %v22 = vld [vmem:[%s3] sm:$0xff]
  %v23 = vld [vmem:[%s3 + $0x8] sm:$0xff]
  %v24 = vld [vmem:[%s3 + $0x10] sm:$0xff]
  %v25 = vld [vmem:[%s3 + $0x18] sm:$0xff]
  %v26 = vld [vmem:[%s0] sm:$0xff]
  %v27 = vld [vmem:[%s0 + $0x8] sm:$0xff]
  %v28 = vld [vmem:[%s1] sm:$0xff]
  %v29 = vld [vmem:[%s1 + $0x8] sm:$0xff]
  %v30 = vld [vmem:[%s1 + $0x10] sm:$0xff]
  %v31 = vld [vmem:[%s1 + $0x18] sm:$0xff]
  %v32 = vld [vmem:[%s1 + $0x20] sm:$0xff]
  %v33 = vld [vmem:[%s1 + $0x28] sm:$0xff]
  %v34 = vld [vmem:[%s1 + $0x30] sm:$0xff]
  %v35 = vld [vmem:[%s1 + $0x38] sm:$0xff]
  %v36 = vld [vmem:[%s1 + $0x40] sm:$0xff]
  %v37 = vld [vmem:[%s1 + $0x48] sm:$0xff]
  %v38 = vld [vmem:[%s1 + $0x50] sm:$0xff]
  %v39 = vld [vmem:[%s1 + $0x58] sm:$0xff]
  %v40 = vld [vmem:[%s1 + $0x60] sm:$0xff]
  %v41 = vld [vmem:[%s1 + $0x68] sm:$0xff]
  %v42 = vld [vmem:[%s1 + $0x70] sm:$0xff]
  %v43 = vld [vmem:[%s1 + $0x78] sm:$0xff]
  %v44 = vld [vmem:[%s1 + $0x80] sm:$0xff]
  %v45 = vld [vmem:[%s1 + $0x88] sm:$0xff]
  %v46 = vld [vmem:[%s1 + $0x90] sm:$0xff]
  %v47 = vld [vmem:[%s1 + $0x98] sm:$0xff]
  %v48 = vld [vmem:[%s1 + $0xa0] sm:$0xff]
  %v49 = vld [vmem:[%s1 + $0xa8] sm:$0xff]
  %v50 = vld [vmem:[%s1 + $0xb0] sm:$0xff]
  %v51 = vld [vmem:[%s1 + $0xb8] sm:$0xff]
  %v52 = vld [vmem:[%s1 + $0xc0] sm:$0xff]
  %v53 = vld [vmem:[%s1 + $0xc8] sm:$0xff]
  %v54 = vld [vmem:[%s1 + $0xd0] sm:$0xff]
  %v55 = vld [vmem:[%s1 + $0xd8] sm:$0xff]
  %v56 = vld [vmem:[%s1 + $0xe0] sm:$0xff]
  %v57 = vld [vmem:[%s1 + $0xe8] sm:$0xff]
  %v58 = vld [vmem:[%s1 + $0xf0] sm:$0xff]
  %v59 = vld [vmem:[%s1 + $0xf8] sm:$0xff]
  %60 = vmatpush.xpose.msra.mxu0 %v43
  %61 = vmatpush.xpose.msra.mxu0 %v42
  %62 = vmatpush.xpose.msra.mxu0 %v41
  %63 = vmatpush.xpose.msra.mxu0 %v40
  %64 = vmatpush.xpose.msra.mxu0 %v39
  %65 = vmatpush.xpose.msra.mxu0 %v38
  %66 = vmatpush.xpose.msra.mxu0 %v37
  %67 = vmatpush.xpose.msra.mxu0 %v36
  %68 = vmatpush.xpose.msra.mxu0 %v35
  %69 = vmatpush.xpose.msra.mxu0 %v34
  %70 = vmatpush.xpose.msra.mxu0 %v33
  %71 = vmatpush.xpose.msra.mxu0 %v32
  %72 = vmatpush.xpose.msra.mxu0 %v31
  %73 = vmatpush.xpose.msra.mxu0 %v30
  %74 = vmatpush.xpose.msra.mxu0 %v29
  %75 = vmatpush.xpose.msra.mxu0 %v28
  %76 = vmatmul.f32.gmra.mxu0 %v26
  %v77 = vpop.f32.mrf.mxu0
  %v78 = vadd.f32 0.0, %v77
  %79 = vmatmul.f32.gmra.mxu0 %v27
  %v80 = vpop.f32.mrf.mxu0
  %v81 = vadd.f32 0.0, %v80
  %82 = vdwg.mxu0
  %83 = vmatpush.xpose.msra.mxu0 %v59
  %84 = vmatpush.xpose.msra.mxu0 %v58
  %85 = vmatpush.xpose.msra.mxu0 %v57
  %86 = vmatpush.xpose.msra.mxu0 %v56
  %87 = vmatpush.xpose.msra.mxu0 %v55
  %88 = vmatpush.xpose.msra.mxu0 %v54
  %89 = vmatpush.xpose.msra.mxu0 %v53
  %90 = vmatpush.xpose.msra.mxu0 %v52
  %91 = vmatpush.xpose.msra.mxu0 %v51
  %92 = vmatpush.xpose.msra.mxu0 %v50
  %93 = vmatpush.xpose.msra.mxu0 %v49
  %94 = vmatpush.xpose.msra.mxu0 %v48
  %95 = vmatpush.xpose.msra.mxu0 %v47
  %96 = vmatpush.xpose.msra.mxu0 %v46
  %97 = vmatpush.xpose.msra.mxu0 %v45
  %98 = vmatpush.xpose.msra.mxu0 %v44
  %99 = vmatmul.f32.gmra.mxu0 %v26
  %v100 = vpop.f32.mrf.mxu0
  %v101 = vadd.f32 0.0, %v100
  %102 = vmatmul.f32.gmra.mxu0 %v27
  %v103 = vpop.f32.mrf.mxu0
  %v104 = vadd.f32 0.0, %v103
  %105 = vdwg.mxu0
  %v106 = vadd.f32 %v22, %v78
  %v107 = vadd.f32 %v23, %v101
  %v108 = vadd.f32 %v24, %v81
  %v109 = vadd.f32 %v25, %v104
  %110 = vst [vmem:[%s3] sm:$0xff] %v106
  %111 = vst [vmem:[%s3 + $0x8] sm:$0xff] %v107
  %112 = vst [vmem:[%s3 + $0x10] sm:$0xff] %v108
  %113 = vst [vmem:[%s3 + $0x18] sm:$0xff] %v109
  // Predicated region
  $region18: #{linear_norm_forward.1} parent=0 // pred_check
    %p114 = pneg %p14
  $region19: #{linear_norm_forward.1} parent=0 // pred_check_branch
    %116 = sbr.rel (%p114) target = $region21
  $region20: #{linear_norm_forward.1} parent=0 // pred_region
    %v117 = vld [vmem:[%s3] sm:$0xff]
    %v118 = vld [vmem:[%s3 + $0x8] sm:$0xff]
    %v119 = vld [vmem:[%s3 + $0x10] sm:$0xff]
    %v120 = vld [vmem:[%s3 + $0x18] sm:$0xff]
    %v121 = vld [vmem:[%s2] sm:$0x3]
    %v123 = vperm.slane %v121, 0
    %v124 = vperm.slane %v121, 1
    %v127 = vadd.f32 %v117, %v123
    %v128 = vadd.f32 %v118, %v124
    %v129 = vadd.f32 %v119, %v123
    %v130 = vadd.f32 %v120, %v124
    %131 = vst [vmem:[%s3] sm:$0xff] %v127
    %132 = vst [vmem:[%s3 + $0x8] sm:$0xff] %v128
    %133 = vst [vmem:[%s3 + $0x10] sm:$0xff] %v129
    %134 = vst [vmem:[%s3 + $0x18] sm:$0xff] %v130
  $region21: #{linear_norm_forward.1} parent=0 // pred_fallthru
    _
  // Predicated region
  $region22: #{linear_norm_forward.1} parent=0 // pred_check
    _
  $region23: #{linear_norm_forward.1} parent=0 // pred_check_branch
    %136 = sbr.rel (0) target = $region25
  $region24: #{linear_norm_forward.1} parent=0 // pred_region
    _
  $region25: #{linear_norm_forward.1} parent=0 // pred_fallthru
    _
  // Predicated region
  $region26: #{linear_norm_forward.1} parent=0 // pred_check
    _
  $region27: #{linear_norm_forward.1} parent=0 // pred_check_branch
    %138 = sbr.rel (0) target = $region29
  $region28: #{linear_norm_forward.1} parent=0 // pred_region
    _
  $region29: #{linear_norm_forward.1} parent=0 // pred_fallthru
    _

</llo_original>
